<compile_context>
chip_gen: v5e
topology: v5e:2x2
jax: 0.10.0
libtpu: 0.0.40
codegen_flags: <defaults>
</compile_context>

<pallas_src>
import math

import jax
import jax.numpy as jnp
import numpy as np
from jax.experimental import pallas as pl
from jax.experimental.pallas import tpu as pltpu


def _drop_path_kernel(mask_ref, x_ref, o_ref):
    # (b_tile, f_tile) * (b_tile, 1) -> lane-broadcast multiply, stays in x.dtype.
    o_ref[...] = x_ref[...] * mask_ref[...]


def _choose_tiles(b, f, itemsize, max_block_bytes, max_b_tile):
    """Pick (b_tile, f_tile).

    b_tile: full batch if small, else a multiple of 8 (edge blocks are masked
            by Pallas).
    f_tile: multiple of 128 (or the full feature dim if it is smaller), sized
            so one block buffer stays under max_block_bytes.
    """
    if b <= max_b_tile:
        b_tile = b                                  # full dim -> always legal
    else:
        b_tile = (max_b_tile // 8) * 8              # multiple of 8
    cand = max(128, (max_block_bytes // max(1, b_tile * itemsize)) // 128 * 128)
    f_tile = f if f <= cand else cand               # full dim or multiple of 128
    return b_tile, f_tile


def drop_path(x, drop_prob=0.0, training=False, scale_by_keep=True, seed=0,
              max_block_bytes=2 << 20, max_b_tile=512):
    """JAX/Pallas equivalent of DropPath.drop_path (forward only)."""
    if drop_prob == 0.0 or not training:
        return x
    keep_prob = 1.0 - drop_prob

    orig_shape = x.shape
    b = x.shape[0]
    f = int(math.prod(x.shape[1:])) if x.ndim > 1 else 1
    itemsize = jnp.dtype(x.dtype).itemsize

    # Per-sample keep/scale mask, computed once in the wrapper (B values).
    key = jax.random.PRNGKey(seed)
    keep = jax.random.bernoulli(key, p=keep_prob, shape=(b, 1))
    scale = (1.0 / keep_prob) if (scale_by_keep and keep_prob > 0.0) else 1.0
    mask = (keep.astype(jnp.float32) * jnp.float32(scale)).astype(x.dtype)

    # Flatten to (B, F); no padding -- edge blocks are handled by Pallas.
    x2 = x.reshape(b, f)
    b_tile, f_tile = _choose_tiles(b, f, itemsize, max_block_bytes, max_b_tile)
    grid = (pl.cdiv(b, b_tile), pl.cdiv(f, f_tile))

    out = pl.pallas_call(
        _drop_path_kernel,
        out_shape=jax.ShapeDtypeStruct((b, f), x.dtype),
        grid=grid,
        in_specs=[
            pl.BlockSpec((b_tile, 1), lambda i, j: (i, 0)),       # per-sample mask
            pl.BlockSpec((b_tile, f_tile), lambda i, j: (i, j)),  # x tile
        ],
        out_specs=pl.BlockSpec((b_tile, f_tile), lambda i, j: (i, j)),
        input_output_aliases={1: 0},  # output may reuse x's buffer when dead
        compiler_params=pltpu.CompilerParams(
            dimension_semantics=("parallel", "parallel"),
        ),
        cost_estimate=pl.CostEstimate(
            flops=b * f,
            transcendentals=0,
            bytes_accessed=2 * b * f * itemsize + b * itemsize,
        ),
    )(mask, x2)

    return out.reshape(orig_shape)


class DropPath:
    """Mirror of the PyTorch module (no parameters)."""

    def __init__(self, drop_prob=None, scale_by_keep=True):
        self.drop_prob = drop_prob
        self.scale_by_keep = scale_by_keep
        self.training = True

    def __call__(self, x, seed=0):
        return drop_path(x, self.drop_prob, self.training, self.scale_by_keep, seed)


def _check_valid(y_np, x_np, keep_prob, tol=1e-5):
    for i in range(x_np.shape[0]):
        kept = np.allclose(y_np[i], x_np[i] / keep_prob, rtol=tol, atol=tol)
        dropped = np.allclose(y_np[i], 0.0, atol=tol)
        assert kept or dropped, f"sample {i}: not a valid drop-path output"


if __name__ == "__main__":
    key = jax.random.PRNGKey(0)
    drop_prob = 0.25
    keep_prob = 1.0 - drop_prob

    # Training path: drop_prob > 0 -> kernel runs.
    x = jax.random.normal(key, (2, 4, 16, 16), dtype=jnp.float32)
    mod = DropPath(drop_prob=drop_prob, scale_by_keep=True)
    mod.training = True
    y = jax.block_until_ready(mod(x, seed=42))
    assert y.shape == x.shape and y.dtype == x.dtype
    _check_valid(np.asarray(y), np.asarray(x), keep_prob)

    # Non-multiple-of-128 feature count (lane-masked single block, no padding).
    x_odd = jax.random.normal(jax.random.PRNGKey(1), (2, 3, 5, 7), dtype=jnp.float32)
    y_odd = jax.block_until_ready(mod(x_odd, seed=7))
    assert y_odd.shape == x_odd.shape
    _check_valid(np.asarray(y_odd), np.asarray(x_odd), keep_prob)

    # bf16 path: multiply happens natively in bf16 (no f32 tile upcast).
    x_bf = x.astype(jnp.bfloat16)
    y_bf = jax.block_until_ready(mod(x_bf, seed=3))
    assert y_bf.shape == x_bf.shape and y_bf.dtype == jnp.bfloat16

    # Force multi-tile grid with partial edge blocks on BOTH axes
    # (tiny block budget + small batch-tile cap) to exercise edge masking.
    x_edge = jax.random.normal(jax.random.PRNGKey(2), (10, 5, 10, 25), dtype=jnp.float32)
    y_edge = jax.block_until_ready(
        drop_path(x_edge, drop_prob, True, True, seed=11,
                  max_block_bytes=4096, max_b_tile=8))
    assert y_edge.shape == x_edge.shape
    _check_valid(np.asarray(y_edge), np.asarray(x_edge), keep_prob)

    # Eval path: identity.
    mod.training = False
    y_eval = jax.block_until_ready(mod(x, seed=42))
    assert np.allclose(np.asarray(y_eval), np.asarray(x))

    print("KERNEL_OK")
</pallas_src>

<mosaic_0001>
module attributes {stable_mosaic.version = 11 : i64} {
  func.func @_drop_path_kernel(%arg0: i32, %arg1: i32, %arg2: memref<2x1xf32, #tpu.memory_space<vmem>>, %arg3: memref<2x1024xf32, #tpu.memory_space<vmem>>, %arg4: memref<2x1024xf32, #tpu.memory_space<vmem>>) attributes {dimension_semantics = [#tpu.dimension_semantics<parallel>, #tpu.dimension_semantics<parallel>], iteration_bounds = array<i64: 1, 1>, scalar_prefetch = 0 : i64, scratch_operands = 0 : i64, tpu.core_type = #tpu.core_type<tc>, window_params = [{transform_indices = @transform_0, window_bounds = array<i64: 2, 1>}, {transform_indices = @transform_1, window_bounds = array<i64: 2, 1024>}, {transform_indices = @transform_2, window_bounds = array<i64: 2, 1024>}]} {
    %c0 = arith.constant 0 : index
    %c0_0 = arith.constant 0 : index
    %0 = vector.load %arg3[%c0, %c0_0] : memref<2x1024xf32, #tpu.memory_space<vmem>>, vector<2x1024xf32>
    %c0_1 = arith.constant 0 : index
    %c0_2 = arith.constant 0 : index
    %1 = vector.load %arg2[%c0_1, %c0_2] : memref<2x1xf32, #tpu.memory_space<vmem>>, vector<2x1xf32>
    %2 = vector.broadcast %1 : vector<2x1xf32> to vector<2x1024xf32>
    %3 = arith.mulf %0, %2 : vector<2x1024xf32>
    %c0_3 = arith.constant 0 : index
    %c0_4 = arith.constant 0 : index
    %4 = vector.load %arg4[%c0_3, %c0_4] : memref<2x1024xf32, #tpu.memory_space<vmem>>, vector<2x1024xf32>
    tpu.vector_store %arg4[%c0_3, %c0_4], %3 {strides = array<i32>} : memref<2x1024xf32, #tpu.memory_space<vmem>>, vector<2x1024xf32>,
    return
  }
  func.func @transform_0(%arg0: i32, %arg1: i32) -> (i32, i32) {
    %c0_i32 = arith.constant 0 : i32
    %c0_i32_0 = arith.constant 0 : i32
    return %arg0, %c0_i32 : i32, i32
  }
  func.func @transform_1(%arg0: i32, %arg1: i32) -> (i32, i32) {
    %c0_i32 = arith.constant 0 : i32
    return %arg0, %arg1 : i32, i32
  }
  func.func @transform_2(%arg0: i32, %arg1: i32) -> (i32, i32) {
    %c0_i32 = arith.constant 0 : i32
    return %arg0, %arg1 : i32, i32
  }
}

</mosaic_0001>

<llo_original>
// kernel: tpu_custom_call.1
$region0: #{tpu_custom_call.1}
  #allocation0 [shape = 'u32[]', space=smem, size = 0x4, offset = 0x4, fixed_abs, tag = 'smem constant byte address 0x4 - core index']
  #allocation1 [shape = 'u32[72,128]{1,0:T(1,128)}', space=vmem, size = 0x9000, scoped, tag = 'internal scratch']
  %s0 = inlined_call_operand.vmem [shape: f32[2,1], index: 0, kind: input, shape index: {}]
  %s1 = inlined_call_operand.hbm [shape: f32[2,1024], index: 1, kind: input, shape index: {}, may-alias: {1,2}]
  %s2 = inlined_call_operand.hbm [shape: f32[2,1024], index: 2, kind: output, shape index: {}, may-alias: {1,2}]
  %s3 = sld [smem:[#allocation0]]
  $region22: #{tpu_custom_call.1} parent=0
    _
  %s5 = ssub.s32 1, %s3
  %s6 = scalar_select 0, %s5, %s3
  $region1: #{tpu_custom_call.1} parent=0
    #allocation2 [shape = 'u8[8192]{0}', space=vmem, size = 0x2000, scoped, tag = 'input window, operand 1, single buffered']
    #allocation3 [shape = 's32[1]{0}', space=sflag, size = 0x4, scoped, tag = 'scoped memory for tpu_custom_call.1']
    #allocation4 [shape = 's32[1]{0}', space=sflag, size = 0x4, scoped, tag = 'scoped memory for tpu_custom_call.1']
    #allocation5 [shape = 'u8[8192]{0}', space=vmem, size = 0x2000, scoped, tag = 'output window, operand 0, single buffered']
    %7 = vsyncpa [#allocation3], 0
    %8 = vsyncpa [#allocation4], 0
    // Predicated region
    $region2: #{tpu_custom_call.1} parent=1 // pred_check
      _
    $region3: #{tpu_custom_call.1} parent=1 // pred_check_branch
      %10 = sbr.rel (0) target = $region5
    $region4: #{tpu_custom_call.1} parent=1 // pred_region
      _
    $region5: #{tpu_custom_call.1} parent=1 // pred_fallthru
      _
    // Predicated region
    $region6: #{tpu_custom_call.1} parent=1 // pred_check
      _
    $region7: #{tpu_custom_call.1} parent=1 // pred_check_branch
      %12 = sbr.rel (0) target = $region9
    $region8: #{tpu_custom_call.1} parent=1 // pred_region
      %14 = vsyncadd [#allocation3], 0
      %s16 = sshll.u32 %s1, 4
      %s17 = int_to_ptr.hbm [resolvable:$true] %s16
      %s18 = sshll.u32 [#allocation2], 4
      %s19 = int_to_ptr.vmem [resolvable:$true] %s18
      %21 = dma.hbm_to_vmem [thread:$0]  %s17, 256, %s19, [#allocation3]
    $region9: #{tpu_custom_call.1} parent=1 // pred_fallthru
      _
    // Predicated region
    $region10: #{tpu_custom_call.1} parent=1 // pred_check
      _
    $region11: #{tpu_custom_call.1} parent=1 // pred_check_branch
      %23 = sbr.rel (0) target = $region13
    $region12: #{tpu_custom_call.1} parent=1 // pred_region
      %25 = dma.done [#allocation3], 256
    $region13: #{tpu_custom_call.1} parent=1 // pred_fallthru
      _
    %v26 = vld [vmem:[#allocation2] sm:$0xff]
    %v27 = vld [vmem:[#allocation2 + $0x8] sm:$0xff]
    %v28 = vld [vmem:[%s0] sm:$0x3]
    %30 = vset.pattern.permute.xlu0 0
    %31 = vperm.xlu0 %30, %v28
    %v32 = vpop.permute.xlu0 %31
    %v34 = vunpack.c.l.s4 269488144
    %v35 = vunpack.c.0.s8 %v34
    %v36 = vperm.slane %v32, %v35
    %v38 = vmul.f32 %v26, %v36
    %v39 = vmul.f32 %v27, %v36
    %40 = vst [vmem:[#allocation5] sm:$0xff] %v38
    %41 = vst [vmem:[#allocation5 + $0x8] sm:$0xff] %v39
    // Predicated region
    $region14: #{tpu_custom_call.1} parent=1 // pred_check
      _
    $region15: #{tpu_custom_call.1} parent=1 // pred_check_branch
      %43 = sbr.rel (0) target = $region17
    $region16: #{tpu_custom_call.1} parent=1 // pred_region
      %45 = vsyncadd [#allocation4], 0
      %s47 = sshll.u32 [#allocation5], 4
      %s48 = int_to_ptr.vmem [resolvable:$true] %s47
      %s49 = sshll.u32 %s2, 4
      %s50 = int_to_ptr.hbm [resolvable:$true] %s49
      %52 = dma.vmem_to_hbm [thread:$0]  %s48, 256, %s50, [#allocation4]
    $region17: #{tpu_custom_call.1} parent=1 // pred_fallthru
      _
    // Predicated region
    $region18: #{tpu_custom_call.1} parent=1 // pred_check
      _
    $region19: #{tpu_custom_call.1} parent=1 // pred_check_branch
      %54 = sbr.rel (0) target = $region21
    $region20: #{tpu_custom_call.1} parent=1 // pred_region
      %56 = dma.done [#allocation4], 256
    $region21: #{tpu_custom_call.1} parent=1 // pred_fallthru
      _
    %57 = vsyncpa [#allocation3], 1
    %58 = vsyncpa [#allocation4], 1

</llo_original>
